<compile_context>
chip_gen: v6e
topology: v6e:2x2x1
jax: 0.10.0
libtpu: 0.0.40
codegen_flags: <defaults>
</compile_context>

<pallas_src>
import jax
import jax.numpy as jnp
from jax.experimental import pallas as pl
from jax.experimental.pallas import tpu as pltpu


def _general_attention_kernel(q_ref, ctx_ref, wv_ref, uv_ref, h_ref, a_ref):
    """One batch block.

    q_ref  : (BB, D)       query rows (T==1 squeezed in the wrapper)
    ctx_ref: (BB, S, 2D)   context rows
    wv_ref : (1, D)        va @ Wa   (loop-invariant, folded in the wrapper)
    uv_ref : (1, 2D)       va @ Ua   (loop-invariant, folded in the wrapper)
    h_ref  : (BB, 2D)      attended context c
    a_ref  : (BB, S)       attention distribution
    """
    q = q_ref[...]                                                    # (BB, D)
    ctx = ctx_ref[...]                                                # (BB, S, 2D)

    # score[b, s] = q_b . wv + ctx[b, s] . uv
    # VPU multiply + lane (last-dim) reduce; no MXU needed after the weight fold.
    q_score = jnp.sum(q * wv_ref[...], axis=-1, keepdims=True)        # (BB, 1)
    ctx_score = jnp.sum(ctx * uv_ref[...], axis=-1)                   # (BB, S)
    score = ctx_score + q_score                                       # (BB, S)

    # softmax over src_len; divide via EUP approximate reciprocal (free slot).
    m = jnp.max(score, axis=-1, keepdims=True)
    p = jnp.exp(score - m)
    denom = jnp.sum(p, axis=-1, keepdims=True)
    align = p * pl.reciprocal(denom, approx=True)                     # (BB, S)

    # c[b] = sum_s align[b, s] * ctx[b, s, :]   (VPU mul + sublane reduce)
    c = jnp.sum(align[:, :, None] * ctx, axis=1)                      # (BB, 2D)

    h_ref[...] = c.astype(h_ref.dtype)
    a_ref[...] = align.astype(a_ref.dtype)


def _pick_block_b(B, S, D2):
    """Batch rows per grid step: big enough to amortize per-step overhead and make
    sublane-dense tiles, small enough that the double-buffered f32 context tiles
    stay well inside VMEM (v7x scoped default 32 MiB of 64 MiB), and >= 2 grid
    steps so dimension_semantics=("parallel",) can shard across v7x's 2 cores."""
    if B <= 8:
        return B                                   # single full-extent block
    rows = (8 * 1024 * 1024) // (S * D2 * 4)       # ~8 MiB context tile budget
    rows = max(8, min(rows, 512, B))
    rows -= rows % 8                               # sublane-aligned output tiles
    while rows > 8 and -(-B // rows) < 2:          # keep at least 2 grid steps
        rows = max(8, (rows // 2) - ((rows // 2) % 8))
    return rows


def general_attention(inp, context, wa, ua, va, *, block_b=None):
    """inp: [B, 1, D], context: [B, S, 2D]; weights in PyTorch Linear [out, in]
    convention. Returns (attn_h [1, B, 2D], align_vectors [1, B, S])."""
    B, T, D = inp.shape
    Bc, S, D2 = context.shape
    assert B == Bc and T == 1 and D2 == 2 * D
    out_dtype = inp.dtype

    # Fold the loop-invariant linear layers once (exact: no tanh, no biases).
    wv = va.astype(jnp.float32) @ wa.astype(jnp.float32)              # (1, D)
    uv = va.astype(jnp.float32) @ ua.astype(jnp.float32)              # (1, 2D)

    q2d = inp[:, 0, :]                                                # (B, D)

    bb = _pick_block_b(B, S, D2) if block_b is None else block_b
    Bp = ((B + bb - 1) // bb) * bb
    if Bp != B:
        pad = Bp - B
        q2d = jnp.pad(q2d, ((0, pad), (0, 0)))
        context_p = jnp.pad(context, ((0, pad), (0, 0), (0, 0)))
    else:
        context_p = context

    h, a = pl.pallas_call(
        _general_attention_kernel,
        out_shape=(
            jax.ShapeDtypeStruct((Bp, D2), out_dtype),
            jax.ShapeDtypeStruct((Bp, S), out_dtype),
        ),
        grid_spec=pltpu.PrefetchScalarGridSpec(
            num_scalar_prefetch=0,
            grid=(Bp // bb,),
            in_specs=[
                pl.BlockSpec((bb, D), lambda b: (b, 0)),
                pl.BlockSpec((bb, S, D2), lambda b: (b, 0, 0)),
                pl.BlockSpec((1, D), lambda b: (0, 0)),
                pl.BlockSpec((1, D2), lambda b: (0, 0)),
            ],
            out_specs=[
                pl.BlockSpec((bb, D2), lambda b: (b, 0)),
                pl.BlockSpec((bb, S), lambda b: (b, 0)),
            ],
        ),
        compiler_params=pltpu.CompilerParams(
            dimension_semantics=("parallel",)),
    )(q2d, context_p, wv, uv)

    # mirrors torch: c.transpose(0,1), align.transpose(0,1) with targetL == 1
    attn_h = h[:B][None, :, :]                                        # [1, B, 2D]
    align_vectors = a[:B][None, :, :]                                 # [1, B, S]
    return attn_h, align_vectors


def _reference(inp, context, wa, ua, va):
    """Unfused pure-JAX mirror of the PyTorch forward."""
    wq = jnp.einsum('btd,od->bto', inp, wa)                           # Wa(input)   (B, 1, D)
    uc = jnp.einsum('bsd,od->bso', context, ua)                       # Ua(context) (B, S, D)
    score = jnp.einsum('bsd,od->bso', wq + uc, va)[..., 0]            # va(.)       (B, S)
    align = jax.nn.softmax(score, axis=-1)
    c = jnp.einsum('bs,bsd->bd', align, context)                      # (B, 2D)
    return c[None, :, :], align[None, :, :]


def _run_case(key, B, S, D):
    k1, k2, k3, k4, k5 = jax.random.split(key, 5)
    inp = jax.random.normal(k1, (B, 1, D), dtype=jnp.float32)
    context = jax.random.normal(k2, (B, S, 2 * D), dtype=jnp.float32)
    # Deterministic parameters (PyTorch Linear convention: weight[out, in], no bias).
    wa = jax.random.uniform(k3, (D, D), jnp.float32, -1.0, 1.0) / jnp.sqrt(D)
    ua = jax.random.uniform(k4, (D, 2 * D), jnp.float32, -1.0, 1.0) / jnp.sqrt(2 * D)
    va = jax.random.uniform(k5, (1, D), jnp.float32, -1.0, 1.0) / jnp.sqrt(D)

    attn_h, align_vectors = general_attention(inp, context, wa, ua, va)
    attn_h = jax.block_until_ready(attn_h)
    align_vectors = jax.block_until_ready(align_vectors)

    ref_h, ref_a = _reference(inp, context, wa, ua, va)
    assert attn_h.shape == (1, B, 2 * D)
    assert align_vectors.shape == (1, B, S)
    assert jnp.allclose(attn_h, ref_h, atol=2e-3, rtol=2e-3), \
        float(jnp.max(jnp.abs(attn_h - ref_h)))
    assert jnp.allclose(align_vectors, ref_a, atol=2e-3, rtol=2e-3), \
        float(jnp.max(jnp.abs(align_vectors - ref_a)))


if __name__ == "__main__":
    key = jax.random.PRNGKey(0)
    k_a, k_b = jax.random.split(key)
    # Small module-consistent shape (single full-batch block).
    _run_case(k_a, B=2, S=8, D=32)
    # Batch-blocked path: 3 grid steps of 8 batch rows each.
    _run_case(k_b, B=24, S=16, D=32)
    print("KERNEL_OK")
</pallas_src>

<mosaic_0001>
module attributes {stable_mosaic.version = 11 : i64} {
  func.func @_general_attention_kernel(%arg0: i32, %arg1: memref<2x32xf32, #tpu.memory_space<vmem>>, %arg2: memref<2x8x64xf32, #tpu.memory_space<vmem>>, %arg3: memref<1x32xf32, #tpu.memory_space<vmem>>, %arg4: memref<1x64xf32, #tpu.memory_space<vmem>>, %arg5: memref<2x64xf32, #tpu.memory_space<vmem>>, %arg6: memref<2x8xf32, #tpu.memory_space<vmem>>) attributes {dimension_semantics = [#tpu.dimension_semantics<parallel>], iteration_bounds = array<i64: 1>, scalar_prefetch = 0 : i64, scratch_operands = 0 : i64, tpu.core_type = #tpu.core_type<tc>, window_params = [{transform_indices = @transform_0, window_bounds = array<i64: 2, 32>}, {transform_indices = @transform_1, window_bounds = array<i64: 2, 8, 64>}, {pipeline_mode = #tpu.pipeline_mode<synchronous>, transform_indices = @transform_2, window_bounds = array<i64: 1, 32>}, {pipeline_mode = #tpu.pipeline_mode<synchronous>, transform_indices = @transform_3, window_bounds = array<i64: 1, 64>}, {transform_indices = @transform_4, window_bounds = array<i64: 2, 64>}, {transform_indices = @transform_5, window_bounds = array<i64: 2, 8>}]} {
    %c0 = arith.constant 0 : index
    %c0_0 = arith.constant 0 : index
    %0 = vector.load %arg1[%c0, %c0_0] : memref<2x32xf32, #tpu.memory_space<vmem>>, vector<2x32xf32>
    %c0_1 = arith.constant 0 : index
    %c0_2 = arith.constant 0 : index
    %c0_3 = arith.constant 0 : index
    %1 = vector.load %arg2[%c0_1, %c0_2, %c0_3] : memref<2x8x64xf32, #tpu.memory_space<vmem>>, vector<2x8x64xf32>
    %c0_4 = arith.constant 0 : index
    %c0_5 = arith.constant 0 : index
    %2 = vector.load %arg3[%c0_4, %c0_5] : memref<1x32xf32, #tpu.memory_space<vmem>>, vector<1x32xf32>
    %3 = vector.broadcast %2 : vector<1x32xf32> to vector<2x32xf32>
    %4 = arith.mulf %0, %3 : vector<2x32xf32>
    %cst = arith.constant dense<0.000000e+00> : vector<2xf32>
    %5 = vector.multi_reduction <add>, %4, %cst [1] : vector<2x32xf32> to vector<2xf32>
    %6 = vector.shape_cast %5 : vector<2xf32> to vector<2x1xf32>
    %c0_6 = arith.constant 0 : index
    %c0_7 = arith.constant 0 : index
    %7 = vector.load %arg4[%c0_6, %c0_7] : memref<1x64xf32, #tpu.memory_space<vmem>>, vector<1x64xf32>
    %8 = vector.shape_cast %7 : vector<1x64xf32> to vector<1x1x64xf32>
    %9 = vector.broadcast %8 : vector<1x1x64xf32> to vector<2x8x64xf32>
    %10 = arith.mulf %1, %9 : vector<2x8x64xf32>
    %cst_8 = arith.constant dense<0.000000e+00> : vector<2x8xf32>
    %11 = vector.multi_reduction <add>, %10, %cst_8 [2] : vector<2x8x64xf32> to vector<2x8xf32>
    %12 = vector.broadcast %6 : vector<2x1xf32> to vector<2x8xf32>
    %13 = arith.addf %11, %12 : vector<2x8xf32>
    %cst_9 = arith.constant dense<0xFF800000> : vector<2xf32>
    %14 = vector.multi_reduction <maximumf>, %13, %cst_9 [1] : vector<2x8xf32> to vector<2xf32>
    %15 = vector.shape_cast %14 : vector<2xf32> to vector<2x1xf32>
    %16 = vector.broadcast %15 : vector<2x1xf32> to vector<2x8xf32>
    %17 = arith.subf %13, %16 : vector<2x8xf32>
    %18 = math.exp %17 : vector<2x8xf32>
    %cst_10 = arith.constant dense<0.000000e+00> : vector<2xf32>
    %19 = vector.multi_reduction <add>, %18, %cst_10 [1] : vector<2x8xf32> to vector<2xf32>
    %20 = vector.shape_cast %19 : vector<2xf32> to vector<2x1xf32>
    %21 = tpu.reciprocal %20 {approx = true} : vector<2x1xf32> -> vector<2x1xf32>
    %22 = vector.broadcast %21 : vector<2x1xf32> to vector<2x8xf32>
    %23 = arith.mulf %18, %22 : vector<2x8xf32>
    %24 = vector.shape_cast %23 : vector<2x8xf32> to vector<2x8x1xf32>
    %25 = vector.broadcast %24 : vector<2x8x1xf32> to vector<2x8x64xf32>
    %26 = arith.mulf %25, %1 : vector<2x8x64xf32>
    %cst_11 = arith.constant dense<0.000000e+00> : vector<2x64xf32>
    %27 = vector.multi_reduction <add>, %26, %cst_11 [1] : vector<2x8x64xf32> to vector<2x64xf32>
    %c0_12 = arith.constant 0 : index
    %c0_13 = arith.constant 0 : index
    %28 = vector.load %arg5[%c0_12, %c0_13] : memref<2x64xf32, #tpu.memory_space<vmem>>, vector<2x64xf32>
    tpu.vector_store %arg5[%c0_12, %c0_13], %27 {strides = array<i32>} : memref<2x64xf32, #tpu.memory_space<vmem>>, vector<2x64xf32>,
    %c0_14 = arith.constant 0 : index
    %c0_15 = arith.constant 0 : index
    %29 = vector.load %arg6[%c0_14, %c0_15] : memref<2x8xf32, #tpu.memory_space<vmem>>, vector<2x8xf32>
    tpu.vector_store %arg6[%c0_14, %c0_15], %23 {strides = array<i32>} : memref<2x8xf32, #tpu.memory_space<vmem>>, vector<2x8xf32>,
    return
  }
  func.func @transform_0(%arg0: i32) -> (i32, i32) {
    %c0_i32 = arith.constant 0 : i32
    %c0_i32_0 = arith.constant 0 : i32
    return %arg0, %c0_i32 : i32, i32
  }
  func.func @transform_1(%arg0: i32) -> (i32, i32, i32) {
    %c0_i32 = arith.constant 0 : i32
    %c0_i32_0 = arith.constant 0 : i32
    %c0_i32_1 = arith.constant 0 : i32
    return %arg0, %c0_i32, %c0_i32_0 : i32, i32, i32
  }
  func.func @transform_2(%arg0: i32) -> (i32, i32) {
    %c0_i32 = arith.constant 0 : i32
    %c0_i32_0 = arith.constant 0 : i32
    %c0_i32_1 = arith.constant 0 : i32
    return %c0_i32, %c0_i32_0 : i32, i32
  }
  func.func @transform_3(%arg0: i32) -> (i32, i32) {
    %c0_i32 = arith.constant 0 : i32
    %c0_i32_0 = arith.constant 0 : i32
    %c0_i32_1 = arith.constant 0 : i32
    return %c0_i32, %c0_i32_0 : i32, i32
  }
  func.func @transform_4(%arg0: i32) -> (i32, i32) {
    %c0_i32 = arith.constant 0 : i32
    %c0_i32_0 = arith.constant 0 : i32
    return %arg0, %c0_i32 : i32, i32
  }
  func.func @transform_5(%arg0: i32) -> (i32, i32) {
    %c0_i32 = arith.constant 0 : i32
    %c0_i32_0 = arith.constant 0 : i32
    return %arg0, %c0_i32 : i32, i32
  }
}

</mosaic_0001>

<llo_original>
// kernel: tpu_custom_call.1
$region0: #{tpu_custom_call.1}
  #allocation0 [shape = 'u32[]', space=smem, size = 0x4, offset = 0x4, fixed_abs, tag = 'smem constant byte address 0x4 - core index']
  #allocation1 [shape = 'u32[144,128]{1,0:T(1,128)}', space=vmem, size = 0x12000, scoped, tag = 'internal scratch']
  %s0 = inlined_call_operand.hbm [shape: f32[2,32], index: 0, kind: input, shape index: {}]
  %s1 = inlined_call_operand.hbm [shape: f32[2,8,64], index: 1, kind: input, shape index: {}]
  %s2 = inlined_call_operand.vmem [shape: f32[1,32], index: 2, kind: input, shape index: {}]
  %s3 = inlined_call_operand.vmem [shape: f32[1,64], index: 3, kind: input, shape index: {}]
  %s4 = inlined_call_operand.hbm [shape: f32[2,64], index: 4, kind: output, shape index: {0}]
  %s5 = inlined_call_operand.hbm [shape: f32[2,8], index: 5, kind: output, shape index: {1}]
  %6 = xla_tuple %s4, %s5
  %s7 = sld [smem:[#allocation0]]
  $region42: #{tpu_custom_call.1} parent=0
    _
  %s9 = ssub.s32 1, %s7
  %s10 = scalar_select 0, %s9, %s7
  $region1: #{tpu_custom_call.1} parent=0
    #allocation2 [shape = 'u8[1024]{0}', space=vmem, size = 0x400, scoped, tag = 'input window, operand 0, single buffered']
    #allocation3 [shape = 's32[1]{0}', space=sflag, size = 0x4, scoped, tag = 'scoped memory for tpu_custom_call.1']
    #allocation4 [shape = 's32[1]{0}', space=sflag, size = 0x4, scoped, tag = 'scoped memory for tpu_custom_call.1']
    #allocation5 [shape = 'u8[8192]{0}', space=vmem, size = 0x2000, scoped, tag = 'input window, operand 1, single buffered']
    #allocation6 [shape = 's32[1]{0}', space=sflag, size = 0x4, scoped, tag = 'scoped memory for tpu_custom_call.1']
    #allocation7 [shape = 'u8[1024]{0}', space=vmem, size = 0x400, scoped, tag = 'output window, operand 0, single buffered']
    #allocation8 [shape = 'u8[1024]{0}', space=vmem, size = 0x400, scoped, tag = 'output window, operand 1, single buffered']
    #allocation9 [shape = 's32[1]{0}', space=sflag, size = 0x4, scoped, tag = 'scoped memory for tpu_custom_call.1']
    %11 = vsyncpa [#allocation3], 0
    %12 = vsyncpa [#allocation6], 0
    %13 = vsyncpa [#allocation4], 0
    %14 = vsyncpa [#allocation9], 0
    // Predicated region
    $region2: #{tpu_custom_call.1} parent=1 // pred_check
      _
    $region3: #{tpu_custom_call.1} parent=1 // pred_check_branch
      %16 = sbr.rel (0) target = $region5
    $region4: #{tpu_custom_call.1} parent=1 // pred_region
      %s18 = ssub.s32 32, 32
      %19 = vsyncadd [#allocation3], %s18
      %s21 = sshll.u32 [#allocation2], 4
      %s22 = int_to_ptr.vmem [resolvable:$true] %s21
      %24 = dma.hbm_to_vmem [thread:$0]  %s0, 32, %s22, [#allocation3]
    $region5: #{tpu_custom_call.1} parent=1 // pred_fallthru
      _
    // Predicated region
    $region6: #{tpu_custom_call.1} parent=1 // pred_check
      _
    $region7: #{tpu_custom_call.1} parent=1 // pred_check_branch
      %26 = sbr.rel (0) target = $region9
    $region8: #{tpu_custom_call.1} parent=1 // pred_region
      %s28 = ssub.s32 256, 256
      %29 = vsyncadd [#allocation6], %s28
      %s30 = sshll.u32 [#allocation5], 4
      %s31 = int_to_ptr.vmem [resolvable:$true] %s30
      %36 = dma.hbm_to_vmem [thread:$0]  %s1, 256, %s31, [#allocation6], 128, 128, 8
    $region9: #{tpu_custom_call.1} parent=1 // pred_fallthru
      _
    // Predicated region
    $region10: #{tpu_custom_call.1} parent=1 // pred_check
      _
    $region11: #{tpu_custom_call.1} parent=1 // pred_check_branch
      %38 = sbr.rel (0) target = $region13
    $region12: #{tpu_custom_call.1} parent=1 // pred_region
      _
    $region13: #{tpu_custom_call.1} parent=1 // pred_fallthru
      _
    // Predicated region
    $region14: #{tpu_custom_call.1} parent=1 // pred_check
      _
    $region15: #{tpu_custom_call.1} parent=1 // pred_check_branch
      %40 = sbr.rel (0) target = $region17
    $region16: #{tpu_custom_call.1} parent=1 // pred_region
      _
    $region17: #{tpu_custom_call.1} parent=1 // pred_fallthru
      _
    // Predicated region
    $region18: #{tpu_custom_call.1} parent=1 // pred_check
      _
    $region19: #{tpu_custom_call.1} parent=1 // pred_check_branch
      %42 = sbr.rel (0) target = $region21
    $region20: #{tpu_custom_call.1} parent=1 // pred_region
      %43 = dma.done [#allocation3], 32
    $region21: #{tpu_custom_call.1} parent=1 // pred_fallthru
      _
    // Predicated region
    $region22: #{tpu_custom_call.1} parent=1 // pred_check
      _
    $region23: #{tpu_custom_call.1} parent=1 // pred_check_branch
      %45 = sbr.rel (0) target = $region25
    $region24: #{tpu_custom_call.1} parent=1 // pred_region
      %46 = dma.done [#allocation6], 256
    $region25: #{tpu_custom_call.1} parent=1 // pred_fallthru
      _
    %v47 = vld [vmem:[#allocation2] sm:$0x3]
    %v48 = vld [vmem:[#allocation5] sm:$0xff]
    %v49 = vld [vmem:[#allocation5 + $0x8] sm:$0xff]
    %v50 = vld [vmem:[%s2] sm:$0x1]
    %v52 = vlaneseq
    %v53 = vshrl.u32 %v52, 7
    %v54 = vsub.s32 0, %v53
    %v55 = vrot.slane %v50, %v54
    %v57 = vmul.f32 %v47, %v55
    %vm58 = vcmask 254976
    %v59 = vsel %vm58, %v57, 0.0
    %60 = vadd.xlane.f32.xlu0 %v59
    %v61 = vpop.xlane.xlu0 %60
    %v62 = vld [vmem:[%s3] sm:$0x1]
    %v64 = vlaneseq
    %v65 = vshrl.u32 %v64, 7
    %v66 = vsub.s32 0, %v65
    %v67 = vrot.slane %v62, %v66
    %v69 = vmul.f32 %v48, %v67
    %v70 = vmul.f32 %v49, %v67
    %vm71 = vcmask 523264
    %v72 = vsel %vm71, %v69, 0.0
    %73 = vadd.xlane.f32.xlu0 %v72
    %v74 = vpop.xlane.xlu0 %73
    %v75 = vsel %vm71, %v70, 0.0
    %76 = vadd.xlane.f32.xlu0 %v75
    %v77 = vpop.xlane.xlu0 %76
    %v79 = vlaneseq
    %v80 = vshrl.u32 %v79, 7
    %v81 = vsub.s32 0, %v80
    %v82 = vrot.slane %v61, %v81
    %v83 = vlaneseq
    %v84 = vshrl.u32 %v83, 7
    %v85 = vsub.s32 1, %v84
    %v86 = vrot.slane %v61, %v85
    %v89 = vadd.f32 %v74, %v82
    %v90 = vadd.f32 %v77, %v86
    %93 = vset.pattern.permute.xlu0 0
    %94 = vperm.xlu0 %93, %v89
    %v95 = vpop.permute.xlu0 %94
    %96 = vset.pattern.permute.xlu0 0
    %97 = vperm.xlu0 %96, %v90
    %v98 = vpop.permute.xlu0 %97
    %v99 = vlaneseq
    %v100 = vand.u32 %v99, 127
    %v101 = vlaneseq
    %v102 = vshrl.u32 %v101, 7
    %v103 = vsub.s32 %v100, %v102
    %v104 = vrot.slane %v95, %v103
    %v105 = vlaneseq
    %v106 = vshrl.u32 %v105, 7
    %v107 = vsub.s32 %v100, %v106
    %v108 = vrot.slane %v98, %v107
    %vm109 = vcmask 1041409
    %v110 = vsel %vm109, %v108, %v104
    %vm112 = vcmask 58368
    %v113 = vsel %vm112, %v110, -inf
    %114 = vmax.xlane.f32.xlu0 %v113
    %v115 = vpop.xlane.xlu0 %114
    %v117 = vlaneseq
    %v118 = vshrl.u32 %v117, 7
    %v119 = vsub.s32 0, %v118
    %v120 = vrot.slane %v115, %v119
    %v121 = vlaneseq
    %v122 = vshrl.u32 %v121, 7
    %v123 = vsub.s32 1, %v122
    %v124 = vrot.slane %v115, %v123
    %v127 = vsub.f32 %v89, %v120
    %v128 = vsub.f32 %v90, %v124
    %v129 = vmul.f32 %v127, 1.442695
    %v130 = vpow.pop %v129
    %v131 = vmul.f32 %v128, 1.442695
    %v132 = vpow.pop %v131
    %135 = vset.pattern.permute.xlu0 0
    %136 = vperm.xlu0 %135, %v130
    %v137 = vpop.permute.xlu0 %136
    %138 = vset.pattern.permute.xlu0 0
    %139 = vperm.xlu0 %138, %v132
    %v140 = vpop.permute.xlu0 %139
    %v141 = vlaneseq
    %v142 = vshrl.u32 %v141, 7
    %v143 = vsub.s32 %v100, %v142
    %v144 = vrot.slane %v137, %v143
    %v145 = vlaneseq
    %v146 = vshrl.u32 %v145, 7
    %v147 = vsub.s32 %v100, %v146
    %v148 = vrot.slane %v140, %v147
    %v149 = vsel %vm109, %v148, %v144
    %v151 = vsel %vm112, %v149, 0.0
    %152 = vadd.xlane.f32.xlu0 %v151
    %v153 = vpop.xlane.xlu0 %152
    %v154 = vrcp.pop %v153
    %v156 = vlaneseq
    %v157 = vshrl.u32 %v156, 7
    %v158 = vsub.s32 0, %v157
    %v159 = vrot.slane %v154, %v158
    %v160 = vlaneseq
    %v161 = vshrl.u32 %v160, 7
    %v162 = vsub.s32 1, %v161
    %v163 = vrot.slane %v154, %v162
    %v166 = vmul.f32 %v130, %v159
    %v167 = vmul.f32 %v132, %v163
    %169 = vset.pattern.permute.xlu0 0
    %170 = vperm.xlu0 %169, %v166
    %v171 = vpop.permute.xlu0 %170
    %174 = vset.pattern.permute.xlu0 0
    %175 = vperm.xlu0 %174, %v167
    %v176 = vpop.permute.xlu0 %175
    %v178 = vmul.f32 %v171, %v48
    %v179 = vmul.f32 %v176, %v49
    %v180 = vsel %vm71, %v178, 0.0
    %v181 = vrot.slane %v180, 4
    %v182 = vadd.f32 %v180, %v181
    %v183 = vrot.slane %v182, 2
    %v184 = vadd.f32 %v182, %v183
    %v185 = vrot.slane %v184, 1
    %v186 = vadd.f32 %v184, %v185
    %v187 = vsel %vm71, %v179, 0.0
    %v188 = vrot.slane %v187, 4
    %v189 = vadd.f32 %v187, %v188
    %v190 = vrot.slane %v189, 2
    %v191 = vadd.f32 %v189, %v190
    %v192 = vrot.slane %v191, 1
    %v193 = vadd.f32 %v191, %v192
    %v196 = vsel %vm109, %v193, %v186
    %vm198 = vcmask 517120
    %199 = vst.msk [vmem:[#allocation7] sm:$0x3] %vm198, %v196
    %v200 = vlaneseq
    %v201 = vshrl.u32 %v200, 7
    %v202 = vsub.s32 %v100, %v201
    %v203 = vrot.slane %v171, %v202
    %v204 = vlaneseq
    %v205 = vshrl.u32 %v204, 7
    %v206 = vsub.s32 %v100, %v205
    %v207 = vrot.slane %v176, %v206
    %v208 = vsel %vm109, %v207, %v203
    %210 = vst.msk [vmem:[#allocation8] sm:$0x3] %vm112, %v208
    // Predicated region
    $region26: #{tpu_custom_call.1} parent=1 // pred_check
      _
    $region27: #{tpu_custom_call.1} parent=1 // pred_check_branch
      %212 = sbr.rel (0) target = $region29
    $region28: #{tpu_custom_call.1} parent=1 // pred_region
      %s214 = ssub.s32 32, 32
      %215 = vsyncadd [#allocation4], %s214
      %s217 = sshll.u32 [#allocation7], 4
      %s218 = int_to_ptr.vmem [resolvable:$true] %s217
      %220 = dma.vmem_to_hbm [thread:$0]  %s218, 32, %s4, [#allocation4]
    $region29: #{tpu_custom_call.1} parent=1 // pred_fallthru
      _
    // Predicated region
    $region30: #{tpu_custom_call.1} parent=1 // pred_check
      _
    $region31: #{tpu_custom_call.1} parent=1 // pred_check_branch
      %222 = sbr.rel (0) target = $region33
    $region32: #{tpu_custom_call.1} parent=1 // pred_region
      %s224 = ssub.s32 32, 32
      %225 = vsyncadd [#allocation9], %s224
      %s227 = sshll.u32 [#allocation8], 4
      %s228 = int_to_ptr.vmem [resolvable:$true] %s227
      %230 = dma.vmem_to_hbm [thread:$0]  %s228, 32, %s5, [#allocation9]
    $region33: #{tpu_custom_call.1} parent=1 // pred_fallthru
      _
    // Predicated region
    $region34: #{tpu_custom_call.1} parent=1 // pred_check
      _
    $region35: #{tpu_custom_call.1} parent=1 // pred_check_branch
      %232 = sbr.rel (0) target = $region37
    $region36: #{tpu_custom_call.1} parent=1 // pred_region
      %233 = dma.done [#allocation4], 32
    $region37: #{tpu_custom_call.1} parent=1 // pred_fallthru
      _
    // Predicated region
    $region38: #{tpu_custom_call.1} parent=1 // pred_check
      _
    $region39: #{tpu_custom_call.1} parent=1 // pred_check_branch
      %235 = sbr.rel (0) target = $region41
    $region40: #{tpu_custom_call.1} parent=1 // pred_region
      %236 = dma.done [#allocation9], 32
    $region41: #{tpu_custom_call.1} parent=1 // pred_fallthru
      _
    %237 = vsyncpa [#allocation3], 1
    %238 = vsyncpa [#allocation6], 1
    %239 = vsyncpa [#allocation4], 1
    %240 = vsyncpa [#allocation9], 1

</llo_original>
